<compile_context>
chip_gen: v7x
topology: tpu7x:2x2x1
jax: 0.10.0
libtpu: 0.0.40
codegen_flags: <defaults>
</compile_context>

<pallas_src>
import math

import jax
import jax.numpy as jnp
from jax.experimental import pallas as pl
from jax.experimental.pallas import tpu as pltpu

_LINEAR_VMEM = 32 * 1024 * 1024   # scoped VMEM for the small GEMM kernels
_CORE_VMEM = 48 * 1024 * 1024     # core kernel; stays under v7x's 64 MiB physical


# ----------------------------- row-tiled linear ------------------------------

def _make_linear_kernel(out_dtype):
    def kernel(x_ref, w_ref, b_ref, o_ref):
        acc = jnp.dot(x_ref[...].astype(jnp.bfloat16),
                      w_ref[...].astype(jnp.bfloat16),
                      preferred_element_type=jnp.float32) + b_ref[...]
        o_ref[...] = acc.astype(out_dtype)
    return kernel


def pallas_linear(x, w, b, *, out_dtype=jnp.float32, tile_rows=512):
    """y = x @ w + b ; rows tiled (pipelined DMA / core-sharded), bf16 MXU."""
    M, K = x.shape
    Nout = w.shape[1]
    tm = M if M <= tile_rows else tile_rows
    return pl.pallas_call(
        _make_linear_kernel(out_dtype),
        out_shape=jax.ShapeDtypeStruct((M, Nout), out_dtype),
        grid=(pl.cdiv(M, tm),),
        in_specs=[pl.BlockSpec((tm, K), lambda i: (i, 0)),
                  pl.BlockSpec((K, Nout), lambda i: (0, 0)),
                  pl.BlockSpec((1, Nout), lambda i: (0, 0))],
        out_specs=pl.BlockSpec((tm, Nout), lambda i: (i, 0)),
        compiler_params=pltpu.CompilerParams(
            dimension_semantics=("parallel",),
            vmem_limit_bytes=_LINEAR_VMEM),
    )(x, w, b.reshape(1, Nout))


# ------------- fused sampling-offset / attention-weight projection -----------

def _make_proj_kernel(n_heads, lp, n_off):
    def kernel(q_ref, w_ref, b_ref, off_ref, attw_ref):
        y = (jnp.dot(q_ref[...], w_ref[...],
                     preferred_element_type=jnp.float32) + b_ref[...])
        off_ref[...] = y[:, :n_off]
        for h in range(n_heads):                      # softmax over L*P per head
            lg = y[:, n_off + h * lp:n_off + (h + 1) * lp]
            m = jnp.max(lg, axis=-1, keepdims=True)
            e = jnp.exp(lg - m)
            # direct slice store per head (no trailing concatenate)
            attw_ref[:, h * lp:(h + 1) * lp] = e / jnp.sum(e, -1, keepdims=True)
    return kernel


def pallas_offsets_attw(q2d, w_cat, b_cat, n_off, n_heads, lp, tile_rows=512):
    """Single pallas_call: [offsets | attention logits] matmul + in-kernel softmax."""
    Mq, K = q2d.shape
    Ntot = w_cat.shape[1]
    n_att = Ntot - n_off
    tm = Mq if Mq <= tile_rows else tile_rows
    kernel = _make_proj_kernel(n_heads, lp, n_off)
    return pl.pallas_call(
        kernel,
        out_shape=(jax.ShapeDtypeStruct((Mq, n_off), jnp.float32),
                   jax.ShapeDtypeStruct((Mq, n_att), jnp.float32)),
        grid=(pl.cdiv(Mq, tm),),
        in_specs=[pl.BlockSpec((tm, K), lambda i: (i, 0)),
                  pl.BlockSpec((K, Ntot), lambda i: (0, 0)),
                  pl.BlockSpec((1, Ntot), lambda i: (0, 0))],
        out_specs=(pl.BlockSpec((tm, n_off), lambda i: (i, 0)),
                   pl.BlockSpec((tm, n_att), lambda i: (i, 0))),
        compiler_params=pltpu.CompilerParams(
            dimension_semantics=("parallel",),
            vmem_limit_bytes=_LINEAR_VMEM),
    )(q2d, w_cat, b_cat.reshape(1, Ntot))


# ----------------------------- deformable core --------------------------------

def _roll_lanes(x, shift):
    """Roll along the last (lane/spatial) axis.  XLU rotate when lane width is
    128-aligned (production shapes); jnp.roll (slice+concat) fallback for small
    lane widths used in the unit test."""
    size = x.shape[-1]
    shift = int(shift) % size
    if shift == 0:
        return x
    if size % 128 == 0:
        return pltpu.roll(x, shift, axis=x.ndim - 1)
    return jnp.roll(x, shift, axis=-1)


def _make_deform_kernel(spatial_shapes, n_heads, n_levels, n_points, d_head, tq):
    M, L, P, D, TQ = n_heads, n_levels, n_points, d_head, tq
    MLP = M * L * P
    starts, s = [], 0
    for (H, W) in spatial_shapes:
        starts.append(s)
        s += H * W

    def kernel(value_ref, locx_ref, locy_ref, attw_ref, wout_ref, bout_ref,
               o_ref, core_ref):
        # value_ref: (1, Len_in, C) bf16 (resident across q-tiles)
        # locx/locy/attw: (1, TQ, MLP) f32   wout: (C, C) f32   bout: (1, C) f32
        # o_ref: (1, TQ, C) f32              core_ref: VMEM scratch (TQ, C) f32

        # Per-(head, level, point) level extents, lane-dense over MLP columns.
        lvl = (jax.lax.broadcasted_iota(jnp.int32, (1, MLP), 1) // P) % L
        w_row = jnp.zeros((1, MLP), jnp.float32)
        h_row = jnp.zeros((1, MLP), jnp.float32)
        for l, (Hl, Wl) in enumerate(spatial_shapes):
            is_l = lvl == l
            w_row = jnp.where(is_l, float(Wl), w_row)
            h_row = jnp.where(is_l, float(Hl), h_row)
        wi_row = w_row.astype(jnp.int32)
        hi_row = h_row.astype(jnp.int32)

        # Lane-dense per-sample math across all heads/levels/points at once.
        x = locx_ref[0] * w_row - 0.5                   # align_corners=False
        y = locy_ref[0] * h_row - 0.5
        aw = attw_ref[0]
        x0 = jnp.floor(x)
        y0 = jnp.floor(y)
        fx = x - x0
        fy = y - y0
        x0i = x0.astype(jnp.int32)
        y0i = y0.astype(jnp.int32)
        x1i = x0i + 1
        y1i = y0i + 1
        vx0 = ((x0i >= 0) & (x0i < wi_row)).astype(jnp.float32)
        vx1 = ((x1i >= 0) & (x1i < wi_row)).astype(jnp.float32)
        vy0 = ((y0i >= 0) & (y0i < hi_row)).astype(jnp.float32)
        vy1 = ((y1i >= 0) & (y1i < hi_row)).astype(jnp.float32)
        # zero-padding validity AND the softmaxed attention weight folded in
        w00 = (1.0 - fx) * (1.0 - fy) * aw * vx0 * vy0
        w01 = fx * (1.0 - fy) * aw * vx1 * vy0
        w10 = (1.0 - fx) * fy * aw * vx0 * vy1
        w11 = fx * fy * aw * vx1 * vy1

        # Roll-from-anchor corner scheme: build the one-hot only at an anchor
        # index; corners 01/10/11 come from lane rolls of the weighted anchor
        # sums.  When x0<0 / y0<0 the anchor is bumped one column / row and the
        # corner weights remapped so the anchor is in range whenever any corner
        # weight is non-zero; all wrap-around roll contributions carry zero
        # weight (vx1/vy1 masking), so the scheme is exact.
        dxf = (x0i < 0).astype(jnp.float32)
        dyf = (y0i < 0).astype(jnp.float32)
        ws0 = w00 + dxf * w01 + dyf * w10 + dxf * dyf * w11   # weight at anchor
        ws1 = (1.0 - dxf) * (w01 + dyf * w11)                  # anchor + 1
        wsw = (1.0 - dyf) * (w10 + dxf * w11)                  # anchor + W
        wsw1 = (1.0 - dyf) * (1.0 - dxf) * w11                 # anchor + W + 1
        anchor = ((y0i + dyf.astype(jnp.int32)) * wi_row
                  + (x0i + dxf.astype(jnp.int32)))

        # Head-outer / level-inner: single live (TQ, D) f32 accumulator per
        # head, stored straight into the (TQ, C) core scratch slice.
        for h in range(M):
            acc = jnp.zeros((TQ, D), jnp.float32)
            for l, (Hl, Wl) in enumerate(spatial_shapes):
                S = Hl * Wl
                iota_s = jax.lax.broadcasted_iota(jnp.int32, (TQ, S), 1)
                a0 = jnp.zeros((TQ, S), jnp.float32)
                a1 = jnp.zeros((TQ, S), jnp.float32)
                aw_ = jnp.zeros((TQ, S), jnp.float32)
                aw1 = jnp.zeros((TQ, S), jnp.float32)
                for p in range(P):
                    c = (h * L + l) * P + p
                    oh = (iota_s == anchor[:, c:c + 1]).astype(jnp.float32)
                    a0 = a0 + oh * ws0[:, c:c + 1]
                    a1 = a1 + oh * ws1[:, c:c + 1]
                    aw_ = aw_ + oh * wsw[:, c:c + 1]
                    aw1 = aw1 + oh * wsw1[:, c:c + 1]
                sel = (a0 + _roll_lanes(a1, 1) + _roll_lanes(aw_, Wl)
                       + _roll_lanes(aw1, Wl + 1))
                # value arrives in bf16 -> bf16 MXU contraction, f32 accumulation
                v = value_ref[0, starts[l]:starts[l] + S, h * D:(h + 1) * D]
                acc = acc + jnp.dot(sel.astype(v.dtype), v,
                                    preferred_element_type=jnp.float32)
                # TODO(synk): for encoder-scale levels (S ~ 1e4), switch this
                # dense-selector path to a DMA/take-based gather per point.
            core_ref[:, h * D:(h + 1) * D] = acc

        # Fused output projection epilogue: (TQ, C) @ (C, C) + b, single
        # unmasked lane-dense store, no HBM round trip for the core result.
        out = (jnp.dot(core_ref[...], wout_ref[...],
                       preferred_element_type=jnp.float32) + bout_ref[...])
        o_ref[0] = out.astype(o_ref.dtype)

    return kernel


def pallas_deform_core(value, locx, locy, attw, wout, bout, spatial_shapes,
                       n_heads, n_levels, n_points, d_head, tile_q=256):
    N, Len_in, C = value.shape
    _, Len_q, MLP = locx.shape
    TQ = Len_q if Len_q <= tile_q else tile_q
    # pad the query axis so any Len_q is handled (padded rows have zero
    # attention weight -> contribute nothing and are sliced off afterwards)
    if Len_q % TQ != 0:
        pad = TQ - (Len_q % TQ)
        locx = jnp.pad(locx, ((0, 0), (0, pad), (0, 0)))
        locy = jnp.pad(locy, ((0, 0), (0, pad), (0, 0)))
        attw = jnp.pad(attw, ((0, 0), (0, pad), (0, 0)))
    Lq_pad = locx.shape[1]
    n_qt = Lq_pad // TQ

    kernel = _make_deform_kernel(tuple(spatial_shapes), n_heads, n_levels,
                                 n_points, d_head, TQ)
    s_total = sum(h * w for h, w in spatial_shapes)
    flops = int(2 * N * Lq_pad * n_heads * d_head * s_total
                + 2 * N * Lq_pad * C * C)
    bytes_accessed = int(value.size * value.dtype.itemsize
                         + 4 * (locx.size + locy.size + attw.size
                                + N * Lq_pad * C))
    out = pl.pallas_call(
        kernel,
        out_shape=jax.ShapeDtypeStruct((N, Lq_pad, C), jnp.float32),
        grid=(N, n_qt),
        in_specs=[
            # value block is constant across the query-tile axis -> resident
            pl.BlockSpec((1, Len_in, C), lambda b, q: (b, 0, 0)),
            pl.BlockSpec((1, TQ, MLP), lambda b, q: (b, q, 0)),
            pl.BlockSpec((1, TQ, MLP), lambda b, q: (b, q, 0)),
            pl.BlockSpec((1, TQ, MLP), lambda b, q: (b, q, 0)),
            pl.BlockSpec((C, C), lambda b, q: (0, 0)),
            pl.BlockSpec((1, C), lambda b, q: (0, 0)),
        ],
        out_specs=pl.BlockSpec((1, TQ, C), lambda b, q: (b, q, 0)),
        scratch_shapes=[pltpu.VMEM((TQ, C), jnp.float32)],
        compiler_params=pltpu.CompilerParams(
            # q-tiles are independent -> both axes parallel (uses both TCs on v7x)
            dimension_semantics=("parallel", "parallel"),
            vmem_limit_bytes=_CORE_VMEM),
        cost_estimate=pl.CostEstimate(flops=flops, transcendentals=0,
                                      bytes_accessed=bytes_accessed),
    )(value, locx, locy, attw, wout, bout)
    return out[:, :Len_q, :]


# ----------------------------- parameters -------------------------------------

def init_params(key, d_model, n_levels, n_heads, n_points, weight_jitter=0.05):
    """Deterministic init mirroring MSDeformAttn._reset_parameters.
    _reset_parameters zeroes the sampling_offsets/attention_weights weights; we
    add a small deterministic jitter so sampling positions / weights actually
    depend on the query (forward semantics unchanged)."""
    d = d_model
    k1, k2, k3, k4 = jax.random.split(key, 4)

    def xavier(k, fan_in, fan_out):
        a = math.sqrt(6.0 / (fan_in + fan_out))
        return jax.random.uniform(k, (fan_in, fan_out), jnp.float32, -a, a)

    thetas = jnp.arange(n_heads, dtype=jnp.float32) * (2.0 * math.pi / n_heads)
    grid_init = jnp.stack([jnp.cos(thetas), jnp.sin(thetas)], -1)
    grid_init = grid_init / jnp.max(jnp.abs(grid_init), axis=-1, keepdims=True)
    grid_init = jnp.tile(grid_init[:, None, None, :], (1, n_levels, n_points, 1))
    grid_init = grid_init * jnp.arange(1, n_points + 1, dtype=jnp.float32)[None, None, :, None]

    return {
        'sampling_offsets_w': weight_jitter * jax.random.normal(
            k3, (d, n_heads * n_levels * n_points * 2), jnp.float32),
        'sampling_offsets_b': grid_init.reshape(-1),
        'attention_weights_w': weight_jitter * jax.random.normal(
            k4, (d, n_heads * n_levels * n_points), jnp.float32),
        'attention_weights_b': jnp.zeros((n_heads * n_levels * n_points,), jnp.float32),
        'value_proj_w': xavier(k1, d, d),
        'value_proj_b': jnp.zeros((d,), jnp.float32),
        'output_proj_w': xavier(k2, d, d),
        'output_proj_b': jnp.zeros((d,), jnp.float32),
    }


# ----------------------------- forward (Pallas path) --------------------------

def ms_deform_attn_forward(params, cfg, query, reference_points, input_flatten,
                           input_spatial_shapes, input_level_start_index,
                           input_padding_mask=None):
    # TODO(synk): dynamic_head / cls_o / save_map side branches of the PyTorch
    # forward are not exercised by default (dynamical_head=False) and are omitted.
    d_model = cfg['d_model']
    L, M, P = cfg['n_levels'], cfg['n_heads'], cfg['n_points']
    spatial_shapes = cfg['spatial_shapes']            # static python tuple of (H, W)
    N, Len_q, C = query.shape
    _, Len_in, _ = input_flatten.shape
    assert sum(h * w for h, w in spatial_shapes) == Len_in
    D = d_model // M
    MLP = M * L * P

    # value projection (row-tiled, bf16 MXU); emits bf16 directly for the core
    value = pallas_linear(input_flatten.reshape(N * Len_in, C),
                          params['value_proj_w'], params['value_proj_b'],
                          out_dtype=jnp.bfloat16).reshape(N, Len_in, C)
    if input_padding_mask is not None:
        value = jnp.where(input_padding_mask[..., None], 0.0, value)

    # fused sampling_offsets + attention_weights projection (+ per-head softmax)
    q2d = query.reshape(N * Len_q, C)
    w_cat = jnp.concatenate([params['sampling_offsets_w'],
                             params['attention_weights_w']], axis=1)
    b_cat = jnp.concatenate([params['sampling_offsets_b'],
                             params['attention_weights_b']], axis=0)
    n_off = MLP * 2
    off2d, attw2d = pallas_offsets_attw(q2d, w_cat, b_cat, n_off, M, L * P)
    sampling_offsets = off2d.reshape(N, Len_q, M, L, P, 2)
    attw = attw2d.reshape(N, Len_q, M, L, P)          # already softmaxed per head

    if reference_points.shape[-1] == 2:
        ss = input_spatial_shapes.astype(jnp.float32)
        offset_normalizer = jnp.stack([ss[..., 1], ss[..., 0]], -1)   # (L, 2) = (W, H)
        sampling_locations = (reference_points[:, :, None, :, None, :]
                              + sampling_offsets
                              / offset_normalizer[None, None, None, :, None, :])
    elif reference_points.shape[-1] == 4:
        sampling_locations = (reference_points[:, :, None, :, None, :2]
                              + sampling_offsets / P
                              * reference_points[:, :, None, :, None, 2:] * 0.5)
    else:
        raise ValueError('Last dim of reference_points must be 2 or 4.')

    # lane-dense layouts for the core: queries on sublanes, (head,level,point) lanes
    locx = sampling_locations[..., 0].reshape(N, Len_q, MLP)
    locy = sampling_locations[..., 1].reshape(N, Len_q, MLP)
    attw_flat = attw.reshape(N, Len_q, MLP)

    # deformable core with output_proj fused into the epilogue
    out = pallas_deform_core(value, locx, locy, attw_flat,
                             params['output_proj_w'],
                             params['output_proj_b'].reshape(1, C),
                             spatial_shapes, M, L, P, D)
    return out


# ----------------------------- pure-JAX reference -----------------------------

def _ref_linear(x, w, b):
    return jnp.dot(x, w, precision=jax.lax.Precision.HIGHEST) + b


def _deform_core_ref(value, spatial_shapes, loc, attw):
    # value (N, Len_in, M, D); loc (N, Lq, M, L, P, 2); attw (N, Lq, M, L, P)
    N, _, M, D = value.shape
    _, Lq, _, L, P, _ = loc.shape
    out = jnp.zeros((N, Lq, M, D), jnp.float32)
    start = 0
    for l, (H, W) in enumerate(spatial_shapes):
        v = value[:, start:start + H * W].reshape(N, H, W, M, D)
        x = loc[:, :, :, l, :, 0] * W - 0.5
        y = loc[:, :, :, l, :, 1] * H - 0.5
        x0 = jnp.floor(x); y0 = jnp.floor(y)
        fx = x - x0; fy = y - y0
        x0i = x0.astype(jnp.int32); y0i = y0.astype(jnp.int32)
        n_idx = jnp.arange(N)[:, None, None, None]
        m_idx = jnp.arange(M)[None, None, :, None]

        def samp(xi, yi):
            valid = ((xi >= 0) & (xi < W) & (yi >= 0) & (yi < H)).astype(jnp.float32)
            xc = jnp.clip(xi, 0, W - 1); yc = jnp.clip(yi, 0, H - 1)
            g = v[n_idx, yc, xc, m_idx]              # (N, Lq, M, P, D)
            return g * valid[..., None]

        s = (samp(x0i, y0i) * ((1 - fx) * (1 - fy))[..., None]
             + samp(x0i + 1, y0i) * (fx * (1 - fy))[..., None]
             + samp(x0i, y0i + 1) * ((1 - fx) * fy)[..., None]
             + samp(x0i + 1, y0i + 1) * (fx * fy)[..., None])
        out = out + jnp.sum(s * attw[:, :, :, l, :, None], axis=3)
        start += H * W
    return out.reshape(N, Lq, M * D)


def forward_ref(params, cfg, query, reference_points, input_flatten, input_padding_mask=None):
    L, M, P = cfg['n_levels'], cfg['n_heads'], cfg['n_points']
    spatial_shapes = cfg['spatial_shapes']
    N, Lq, C = query.shape
    _, Lin, _ = input_flatten.shape
    D = C // M
    value = _ref_linear(input_flatten, params['value_proj_w'], params['value_proj_b'])
    if input_padding_mask is not None:
        value = jnp.where(input_padding_mask[..., None], 0.0, value)
    value = value.reshape(N, Lin, M, D)
    so = _ref_linear(query, params['sampling_offsets_w'],
                     params['sampling_offsets_b']).reshape(N, Lq, M, L, P, 2)
    aw = _ref_linear(query, params['attention_weights_w'],
                     params['attention_weights_b']).reshape(N, Lq, M, L * P)
    aw = jax.nn.softmax(aw, axis=-1).reshape(N, Lq, M, L, P)
    ss = jnp.array(spatial_shapes, jnp.float32)
    norm = jnp.stack([ss[:, 1], ss[:, 0]], -1)
    loc = reference_points[:, :, None, :, None, :] + so / norm[None, None, None, :, None, :]
    core = _deform_core_ref(value, spatial_shapes, loc, aw)
    return _ref_linear(core, params['output_proj_w'], params['output_proj_b'])


# ----------------------------- main --------------------------------------------

if __name__ == "__main__":
    d_model, n_levels, n_heads, n_points = 32, 2, 4, 4
    N, Len_q = 2, 8
    spatial_shapes = ((8, 8), (4, 4))
    Len_in = sum(h * w for h, w in spatial_shapes)

    key = jax.random.PRNGKey(0)
    kp, kq, kr, kf = jax.random.split(key, 4)
    params = init_params(kp, d_model, n_levels, n_heads, n_points)
    cfg = dict(d_model=d_model, n_levels=n_levels, n_heads=n_heads,
               n_points=n_points, spatial_shapes=spatial_shapes)

    query = jax.random.normal(kq, (N, Len_q, d_model), jnp.float32)
    reference_points = jax.random.uniform(kr, (N, Len_q, n_levels, 2), jnp.float32)
    input_flatten = jax.random.normal(kf, (N, Len_in, d_model), jnp.float32)
    input_spatial_shapes = jnp.array(spatial_shapes, jnp.int32)
    sizes = input_spatial_shapes[:, 0] * input_spatial_shapes[:, 1]
    input_level_start_index = jnp.concatenate(
        [jnp.zeros((1,), sizes.dtype), jnp.cumsum(sizes)[:-1]])

    out = ms_deform_attn_forward(params, cfg, query, reference_points, input_flatten,
                                 input_spatial_shapes, input_level_start_index,
                                 input_padding_mask=None)
    out = jax.block_until_ready(out)

    ref = forward_ref(params, cfg, query, reference_points, input_flatten, None)
    assert out.shape == (N, Len_q, d_model)
    assert bool(jnp.all(jnp.isfinite(out)))
    # value / core contraction run in bf16 (f32 accumulation) -> looser tolerance
    max_err = float(jnp.max(jnp.abs(out - ref)))
    assert bool(jnp.allclose(out, ref, atol=5e-2, rtol=5e-2)), max_err
    print("KERNEL_OK")
</pallas_src>

<mosaic_0001>
module attributes {stable_mosaic.version = 11 : i64} {
  func.func @kernel(%arg0: i32, %arg1: memref<160x32xf32, #tpu.memory_space<vmem>>, %arg2: memref<32x32xf32, #tpu.memory_space<vmem>>, %arg3: memref<1x32xf32, #tpu.memory_space<vmem>>, %arg4: memref<160x32xbf16, #tpu.memory_space<vmem>>) attributes {dimension_semantics = [#tpu.dimension_semantics<parallel>], iteration_bounds = array<i64: 1>, scalar_prefetch = 0 : i64, scratch_operands = 0 : i64, tpu.core_type = #tpu.core_type<tc>, window_params = [{transform_indices = @transform_0, window_bounds = array<i64: 160, 32>}, {pipeline_mode = #tpu.pipeline_mode<synchronous>, transform_indices = @transform_1, window_bounds = array<i64: 32, 32>}, {pipeline_mode = #tpu.pipeline_mode<synchronous>, transform_indices = @transform_2, window_bounds = array<i64: 1, 32>}, {transform_indices = @transform_3, window_bounds = array<i64: 160, 32>}]} {
    %c0 = arith.constant 0 : index
    %c0_0 = arith.constant 0 : index
    %0 = vector.load %arg1[%c0, %c0_0] : memref<160x32xf32, #tpu.memory_space<vmem>>, vector<160x32xf32>
    %1 = arith.truncf %0 : vector<160x32xf32> to vector<160x32xbf16>
    %c0_1 = arith.constant 0 : index
    %c0_2 = arith.constant 0 : index
    %2 = vector.load %arg2[%c0_1, %c0_2] : memref<32x32xf32, #tpu.memory_space<vmem>>, vector<32x32xf32>
    %3 = arith.truncf %2 : vector<32x32xf32> to vector<32x32xbf16>
    %cst = arith.constant dense<0.000000e+00> : vector<160x32xf32>
    %4 = tpu.matmul %1, %3, %cst {dimension_numbers = #tpu.dot_dimension_numbers<[1], [0], [0], [1], [0, 0, 1, 1], [], []>} : vector<160x32xbf16>, vector<32x32xbf16>, vector<160x32xf32> -> vector<160x32xf32>
    %c0_3 = arith.constant 0 : index
    %c0_4 = arith.constant 0 : index
    %5 = vector.load %arg3[%c0_3, %c0_4] : memref<1x32xf32, #tpu.memory_space<vmem>>, vector<1x32xf32>
    %6 = vector.broadcast %5 : vector<1x32xf32> to vector<160x32xf32>
    %7 = arith.addf %4, %6 : vector<160x32xf32>
    %8 = arith.truncf %7 : vector<160x32xf32> to vector<160x32xbf16>
    %c0_5 = arith.constant 0 : index
    %c0_6 = arith.constant 0 : index
    %9 = vector.load %arg4[%c0_5, %c0_6] : memref<160x32xbf16, #tpu.memory_space<vmem>>, vector<160x32xbf16>
    tpu.vector_store %arg4[%c0_5, %c0_6], %8 {strides = array<i32>} : memref<160x32xbf16, #tpu.memory_space<vmem>>, vector<160x32xbf16>,
    return
  }
  func.func @transform_0(%arg0: i32) -> (i32, i32) {
    %c0_i32 = arith.constant 0 : i32
    %c0_i32_0 = arith.constant 0 : i32
    return %arg0, %c0_i32 : i32, i32
  }
  func.func @transform_1(%arg0: i32) -> (i32, i32) {
    %c0_i32 = arith.constant 0 : i32
    %c0_i32_0 = arith.constant 0 : i32
    %c0_i32_1 = arith.constant 0 : i32
    return %c0_i32, %c0_i32_0 : i32, i32
  }
  func.func @transform_2(%arg0: i32) -> (i32, i32) {
    %c0_i32 = arith.constant 0 : i32
    %c0_i32_0 = arith.constant 0 : i32
    %c0_i32_1 = arith.constant 0 : i32
    return %c0_i32, %c0_i32_0 : i32, i32
  }
  func.func @transform_3(%arg0: i32) -> (i32, i32) {
    %c0_i32 = arith.constant 0 : i32
    %c0_i32_0 = arith.constant 0 : i32
    return %arg0, %c0_i32 : i32, i32
  }
}

</mosaic_0001>

<llo_original>
// kernel: tpu_custom_call.1
$region0: #{tpu_custom_call.1}
  #allocation0 [shape = 'u32[]', space=smem, size = 0x4, offset = 0x4, fixed_abs, tag = 'smem constant byte address 0x4 - core index']
  #allocation1 [shape = 'u32[144,128]{1,0:T(1,128)}', space=vmem, size = 0x12000, scoped, tag = 'internal scratch']
  %s0 = inlined_call_operand.vmem [shape: f32[160,32], index: 0, kind: input, shape index: {}]
  %s1 = inlined_call_operand.vmem [shape: f32[32,32], index: 1, kind: input, shape index: {}]
  %s2 = inlined_call_operand.vmem [shape: f32[1,32], index: 2, kind: input, shape index: {}]
  %s3 = inlined_call_operand.vmem [shape: bf16[160,32], index: 3, kind: output, shape index: {}]
  %s4 = sld [smem:[#allocation0]]
  $region22: #{tpu_custom_call.1} parent=0
    _
  %s6 = ssub.s32 1, %s4
  %s7 = scalar_select 0, %s6, %s4
  // Predicated region
  $region2: #{tpu_custom_call.1} parent=0 // pred_check
    _
  $region3: #{tpu_custom_call.1} parent=0 // pred_check_branch
    %9 = sbr.rel (0) target = $region5
  $region4: #{tpu_custom_call.1} parent=0 // pred_region
    _
  $region5: #{tpu_custom_call.1} parent=0 // pred_fallthru
    _
  // Predicated region
  $region6: #{tpu_custom_call.1} parent=0 // pred_check
    _
  $region7: #{tpu_custom_call.1} parent=0 // pred_check_branch
    %11 = sbr.rel (0) target = $region9
  $region8: #{tpu_custom_call.1} parent=0 // pred_region
    _
  $region9: #{tpu_custom_call.1} parent=0 // pred_fallthru
    _
  // Predicated region
  $region10: #{tpu_custom_call.1} parent=0 // pred_check
    _
  $region11: #{tpu_custom_call.1} parent=0 // pred_check_branch
    %13 = sbr.rel (0) target = $region13
  $region12: #{tpu_custom_call.1} parent=0 // pred_region
    _
  $region13: #{tpu_custom_call.1} parent=0 // pred_fallthru
    _
  %v15 = vld [vmem:[%s0] sm:$0xff]
  %v16 = vld [vmem:[%s0 + $0x8] sm:$0xff]
  %v17 = vld [vmem:[%s0 + $0x10] sm:$0xff]
  %v18 = vld [vmem:[%s0 + $0x18] sm:$0xff]
  %v19 = vld [vmem:[%s0 + $0x20] sm:$0xff]
  %v20 = vld [vmem:[%s0 + $0x28] sm:$0xff]
  %v21 = vld [vmem:[%s0 + $0x30] sm:$0xff]
  %v22 = vld [vmem:[%s0 + $0x38] sm:$0xff]
  %v23 = vld [vmem:[%s0 + $0x40] sm:$0xff]
  %v24 = vld [vmem:[%s0 + $0x48] sm:$0xff]
  %v25 = vld [vmem:[%s0 + $0x50] sm:$0xff]
  %v26 = vld [vmem:[%s0 + $0x58] sm:$0xff]
  %v27 = vld [vmem:[%s0 + $0x60] sm:$0xff]
  %v28 = vld [vmem:[%s0 + $0x68] sm:$0xff]
  %v29 = vld [vmem:[%s0 + $0x70] sm:$0xff]
  %v30 = vld [vmem:[%s0 + $0x78] sm:$0xff]
  %v31 = vld [vmem:[%s0 + $0x80] sm:$0xff]
  %v32 = vld [vmem:[%s0 + $0x88] sm:$0xff]
  %v33 = vld [vmem:[%s0 + $0x90] sm:$0xff]
  %v34 = vld [vmem:[%s0 + $0x98] sm:$0xff]
  %v35 = vpack.c.bf16 %v16, %v15
  %v36 = vpack.c.bf16 %v18, %v17
  %v37 = vpack.c.bf16 %v20, %v19
  %v38 = vpack.c.bf16 %v22, %v21
  %v39 = vpack.c.bf16 %v24, %v23
  %v40 = vpack.c.bf16 %v26, %v25
  %v41 = vpack.c.bf16 %v28, %v27
  %v42 = vpack.c.bf16 %v30, %v29
  %v43 = vpack.c.bf16 %v32, %v31
  %v44 = vpack.c.bf16 %v34, %v33
  %v45 = vld [vmem:[%s1] sm:$0xff]
  %v46 = vld [vmem:[%s1 + $0x8] sm:$0xff]
  %v47 = vld [vmem:[%s1 + $0x10] sm:$0xff]
  %v48 = vld [vmem:[%s1 + $0x18] sm:$0xff]
  %v49 = vpack.c.bf16 %v46, %v45
  %v50 = vpack.c.bf16 %v48, %v47
  %v51 = vld [vmem:[%s2] sm:$0x1]
  %v53 = vlaneseq
  %v54 = vshrl.u32 %v53, 7
  %v55 = vsub.s32 0, %v54
  %v56 = vrot.slane %v51, %v55
  %vm58 = vcmask 261120
  %v60 = vsel %vm58, %v35, 0
  %v63 = vsel %vm58, %v36, 0
  %v66 = vsel %vm58, %v37, 0
  %v69 = vsel %vm58, %v38, 0
  %v72 = vsel %vm58, %v39, 0
  %v75 = vsel %vm58, %v40, 0
  %v78 = vsel %vm58, %v41, 0
  %v81 = vsel %vm58, %v42, 0
  %v84 = vsel %vm58, %v43, 0
  %v87 = vsel %vm58, %v44, 0
  %89 = vmatprep.subr.bf16.mxu0 0
  %90 = vmatpush1.bf16.msra.mxu0 %v49
  %91 = vmatprep.subr.bf16.mxu0 0
  %92 = vmatpush1.bf16.msra.mxu0 %v50
  %93 = vmatprep.subr.bf16.mxu0 0
  %94 = vmatpush1.bf16.msra.mxu0 0
  %95 = vmatprep.subr.bf16.mxu0 0
  %96 = vmatpush1.bf16.msra.mxu0 0
  %97 = vmatprep.subr.bf16.mxu0 0
  %98 = vmatpush1.bf16.msra.mxu0 0
  %99 = vmatprep.subr.bf16.mxu0 0
  %100 = vmatpush1.bf16.msra.mxu0 0
  %101 = vmatprep.subr.bf16.mxu0 0
  %102 = vmatpush1.bf16.msra.mxu0 0
  %103 = vmatprep.subr.bf16.mxu0 0
  %104 = vmatpush1.bf16.msra.mxu0 0
  %105 = vmatprep.subr.bf16.mxu0 0
  %106 = vmatpush1.bf16.msra.mxu0 0
  %107 = vmatprep.subr.bf16.mxu0 0
  %108 = vmatpush1.bf16.msra.mxu0 0
  %109 = vmatprep.subr.bf16.mxu0 0
  %110 = vmatpush1.bf16.msra.mxu0 0
  %111 = vmatprep.subr.bf16.mxu0 0
  %112 = vmatpush1.bf16.msra.mxu0 0
  %113 = vmatprep.subr.bf16.mxu0 0
  %114 = vmatpush1.bf16.msra.mxu0 0
  %115 = vmatprep.subr.bf16.mxu0 0
  %116 = vmatpush1.bf16.msra.mxu0 0
  %117 = vmatprep.subr.bf16.mxu0 0
  %118 = vmatpush1.bf16.msra.mxu0 0
  %119 = vmatprep.subr.bf16.mxu0 0
  %120 = vmatpush1.bf16.msra.mxu0 0
  %121 = vmatprep.mubr.bf16.mxu0 0
  %122 = vmatmul.mubr.bf16.gmra.mrb[0].mxu0 %v60
  %v123 = vpop.f32.mrb[0].mxu0
  %v124 = vadd.f32 %v56, %v123
  %v125 = vpop.f32.mrb[0].mxu0
  %v126 = vpop.f32.mrb[0].mxu0
  %v127 = vadd.f32 %v56, %v126
  %v128 = vpop.f32.mrb[0].mxu0
  %129 = vmatprep.mubr.bf16.mxu0 0
  %130 = vmatmul.mubr.bf16.gmra.mrb[0].mxu0 %v63
  %v131 = vpop.f32.mrb[0].mxu0
  %v132 = vadd.f32 %v56, %v131
  %v133 = vpop.f32.mrb[0].mxu0
  %v134 = vpop.f32.mrb[0].mxu0
  %v135 = vadd.f32 %v56, %v134
  %v136 = vpop.f32.mrb[0].mxu0
  %137 = vmatprep.mubr.bf16.mxu0 0
  %138 = vmatmul.mubr.bf16.gmra.mrb[0].mxu0 %v66
  %v139 = vpop.f32.mrb[0].mxu0
  %v140 = vadd.f32 %v56, %v139
  %v141 = vpop.f32.mrb[0].mxu0
  %v142 = vpop.f32.mrb[0].mxu0
  %v143 = vadd.f32 %v56, %v142
  %v144 = vpop.f32.mrb[0].mxu0
  %145 = vmatprep.mubr.bf16.mxu0 0
  %146 = vmatmul.mubr.bf16.gmra.mrb[0].mxu0 %v69
  %v147 = vpop.f32.mrb[0].mxu0
  %v148 = vadd.f32 %v56, %v147
  %v149 = vpop.f32.mrb[0].mxu0
  %v150 = vpop.f32.mrb[0].mxu0
  %v151 = vadd.f32 %v56, %v150
  %v152 = vpop.f32.mrb[0].mxu0
  %153 = vmatprep.mubr.bf16.mxu0 0
  %154 = vmatmul.mubr.bf16.gmra.mrb[0].mxu0 %v72
  %v155 = vpop.f32.mrb[0].mxu0
  %v156 = vadd.f32 %v56, %v155
  %v157 = vpop.f32.mrb[0].mxu0
  %v158 = vpop.f32.mrb[0].mxu0
  %v159 = vadd.f32 %v56, %v158
  %v160 = vpop.f32.mrb[0].mxu0
  %161 = vmatprep.mubr.bf16.mxu0 0
  %162 = vmatmul.mubr.bf16.gmra.mrb[0].mxu0 %v75
  %v163 = vpop.f32.mrb[0].mxu0
  %v164 = vadd.f32 %v56, %v163
  %v165 = vpop.f32.mrb[0].mxu0
  %v166 = vpop.f32.mrb[0].mxu0
  %v167 = vadd.f32 %v56, %v166
  %v168 = vpop.f32.mrb[0].mxu0
  %169 = vmatprep.mubr.bf16.mxu0 0
  %170 = vmatmul.mubr.bf16.gmra.mrb[0].mxu0 %v78
  %v171 = vpop.f32.mrb[0].mxu0
  %v172 = vadd.f32 %v56, %v171
  %v173 = vpop.f32.mrb[0].mxu0
  %v174 = vpop.f32.mrb[0].mxu0
  %v175 = vadd.f32 %v56, %v174
  %v176 = vpop.f32.mrb[0].mxu0
  %177 = vmatprep.mubr.bf16.mxu0 0
  %178 = vmatmul.mubr.bf16.gmra.mrb[0].mxu0 %v81
  %v179 = vpop.f32.mrb[0].mxu0
  %v180 = vadd.f32 %v56, %v179
  %v181 = vpop.f32.mrb[0].mxu0
  %v182 = vpop.f32.mrb[0].mxu0
  %v183 = vadd.f32 %v56, %v182
  %v184 = vpop.f32.mrb[0].mxu0
  %185 = vmatprep.mubr.bf16.mxu0 0
  %186 = vmatmul.mubr.bf16.gmra.mrb[0].mxu0 %v84
  %v187 = vpop.f32.mrb[0].mxu0
  %v188 = vadd.f32 %v56, %v187
  %v189 = vpop.f32.mrb[0].mxu0
  %v190 = vpop.f32.mrb[0].mxu0
  %v191 = vadd.f32 %v56, %v190
  %v192 = vpop.f32.mrb[0].mxu0
  %193 = vmatprep.mubr.bf16.mxu0 0
  %194 = vmatmul.mubr.bf16.gmra.mrb[0].mxu0 %v87
  %v195 = vpop.f32.mrb[0].mxu0
  %v196 = vadd.f32 %v56, %v195
  %v197 = vpop.f32.mrb[0].mxu0
  %v198 = vpop.f32.mrb[0].mxu0
  %v199 = vadd.f32 %v56, %v198
  %v200 = vpop.f32.mrb[0].mxu0
  %201 = vdwg.mxu0
  %v202 = vpack.c.bf16 %v127, %v124
  %v203 = vpack.c.bf16 %v135, %v132
  %v204 = vpack.c.bf16 %v143, %v140
  %v205 = vpack.c.bf16 %v151, %v148
  %v206 = vpack.c.bf16 %v159, %v156
  %v207 = vpack.c.bf16 %v167, %v164
  %v208 = vpack.c.bf16 %v175, %v172
  %v209 = vpack.c.bf16 %v183, %v180
  %v210 = vpack.c.bf16 %v191, %v188
  %v211 = vpack.c.bf16 %v199, %v196
  %v222 = vunpack.c.l.b16 %v202
  %v223 = vunpack.c.h.b16 %v202
  %v224 = vunpack.c.l.b16 %v203
  %v225 = vunpack.c.h.b16 %v203
  %v226 = vunpack.c.l.b16 %v204
  %v227 = vunpack.c.h.b16 %v204
  %v228 = vunpack.c.l.b16 %v205
  %v229 = vunpack.c.h.b16 %v205
  %v230 = vunpack.c.l.b16 %v206
  %v231 = vunpack.c.h.b16 %v206
  %v232 = vunpack.c.l.b16 %v207
  %v233 = vunpack.c.h.b16 %v207
  %v234 = vunpack.c.l.b16 %v208
  %v235 = vunpack.c.h.b16 %v208
  %v236 = vunpack.c.l.b16 %v209
  %v237 = vunpack.c.h.b16 %v209
  %v238 = vunpack.c.l.b16 %v210
  %v239 = vunpack.c.h.b16 %v210
  %v240 = vunpack.c.l.b16 %v211
  %v241 = vunpack.c.h.b16 %v211
  %v242 = vpack.c.b16 %v222, %v222
  %v243 = vpack.c.b16 %v223, %v223
  %v244 = vpack.c.b16 %v224, %v224
  %v245 = vpack.c.b16 %v225, %v225
  %v246 = vpack.c.b16 %v226, %v226
  %v247 = vpack.c.b16 %v227, %v227
  %v248 = vpack.c.b16 %v228, %v228
  %v249 = vpack.c.b16 %v229, %v229
  %v250 = vpack.c.b16 %v230, %v230
  %v251 = vpack.c.b16 %v231, %v231
  %v252 = vpack.c.b16 %v232, %v232
  %v253 = vpack.c.b16 %v233, %v233
  %v254 = vpack.c.b16 %v234, %v234
  %v255 = vpack.c.b16 %v235, %v235
  %v256 = vpack.c.b16 %v236, %v236
  %v257 = vpack.c.b16 %v237, %v237
  %v258 = vpack.c.b16 %v238, %v238
  %v259 = vpack.c.b16 %v239, %v239
  %v260 = vpack.c.b16 %v240, %v240
  %v261 = vpack.c.b16 %v241, %v241
  %vm282 = vcmask 257024
  %283 = vst.msk [vmem:[%s3] sm:$0xf] %vm282, %v242
  %284 = vst.msk [vmem:[%s3 + $0x4] sm:$0xf] %vm282, %v243
  %285 = vst.msk [vmem:[%s3 + $0x8] sm:$0xf] %vm282, %v244
  %286 = vst.msk [vmem:[%s3 + $0xc] sm:$0xf] %vm282, %v245
  %287 = vst.msk [vmem:[%s3 + $0x10] sm:$0xf] %vm282, %v246
  %288 = vst.msk [vmem:[%s3 + $0x14] sm:$0xf] %vm282, %v247
  %289 = vst.msk [vmem:[%s3 + $0x18] sm:$0xf] %vm282, %v248
  %290 = vst.msk [vmem:[%s3 + $0x1c] sm:$0xf] %vm282, %v249
  %291 = vst.msk [vmem:[%s3 + $0x20] sm:$0xf] %vm282, %v250
  %292 = vst.msk [vmem:[%s3 + $0x24] sm:$0xf] %vm282, %v251
  %293 = vst.msk [vmem:[%s3 + $0x28] sm:$0xf] %vm282, %v252
  %294 = vst.msk [vmem:[%s3 + $0x2c] sm:$0xf] %vm282, %v253
  %295 = vst.msk [vmem:[%s3 + $0x30] sm:$0xf] %vm282, %v254
  %296 = vst.msk [vmem:[%s3 + $0x34] sm:$0xf] %vm282, %v255
  %297 = vst.msk [vmem:[%s3 + $0x38] sm:$0xf] %vm282, %v256
  %298 = vst.msk [vmem:[%s3 + $0x3c] sm:$0xf] %vm282, %v257
  %299 = vst.msk [vmem:[%s3 + $0x40] sm:$0xf] %vm282, %v258
  %300 = vst.msk [vmem:[%s3 + $0x44] sm:$0xf] %vm282, %v259
  %301 = vst.msk [vmem:[%s3 + $0x48] sm:$0xf] %vm282, %v260
  %302 = vst.msk [vmem:[%s3 + $0x4c] sm:$0xf] %vm282, %v261
  // Predicated region
  $region14: #{tpu_custom_call.1} parent=0 // pred_check
    _
  $region15: #{tpu_custom_call.1} parent=0 // pred_check_branch
    %304 = sbr.rel (0) target = $region17
  $region16: #{tpu_custom_call.1} parent=0 // pred_region
    _
  $region17: #{tpu_custom_call.1} parent=0 // pred_fallthru
    _
  // Predicated region
  $region18: #{tpu_custom_call.1} parent=0 // pred_check
    _
  $region19: #{tpu_custom_call.1} parent=0 // pred_check_branch
    %306 = sbr.rel (0) target = $region21
  $region20: #{tpu_custom_call.1} parent=0 // pred_region
    _
  $region21: #{tpu_custom_call.1} parent=0 // pred_fallthru
    _

</llo_original>
